<compile_context>
chip_gen: v7x
topology: tpu7x:2x2x1
jax: 0.10.0
libtpu: 0.0.40
codegen_flags: <defaults>
</compile_context>

<pallas_src>
import functools

import jax
import jax.numpy as jnp
from jax.experimental import pallas as pl
from jax.experimental.pallas import tpu as pltpu

HIDDEN = 64          # logical hidden width (matches nn.Linear(in, 64))
LANE = 128           # TPU lane width — pad the hidden (contraction) dim to this


def _round_up(n, m):
    return ((n + m - 1) // m) * m


def mlp_kernel(x_ref, w1_ref, b1_ref, w2_ref, b2_ref, o_ref):
    # fc1 on the MXU (K = in_dim), bias + tanh on VPU/EUP, all f32.
    h = jnp.dot(x_ref[...], w1_ref[...], preferred_element_type=jnp.float32)
    h = jnp.tanh(h + b1_ref[...])                 # b1 is (1, H_PAD), broadcasts over rows
    # fc2 on the MXU (K = H_PAD lane-dense, N = out_dim).  Output block is only
    # out_dim columns wide, so the HBM writeback carries no padding.
    y = jnp.dot(h, w2_ref[...], preferred_element_type=jnp.float32)
    o_ref[...] = (y + b2_ref[...]).astype(o_ref.dtype)


def prepare_mlp_params(w1, b1, w2, b2):
    """One-time padding of the hidden dim to the 128-lane width.

    Padding is exact: padded hidden units get zero weights + zero bias
    (tanh(0)=0) and zero rows in W2, so outputs are bit-identical.  The output
    dim is NOT padded — the kernel writes only the real out_dim columns.
    """
    in_dim, hidden = w1.shape
    h_pad = _round_up(hidden, LANE)
    w1p = jnp.pad(w1, ((0, 0), (0, h_pad - hidden)))
    b1p = jnp.pad(b1.reshape(1, -1), ((0, 0), (0, h_pad - hidden)))
    w2p = jnp.pad(w2, ((0, h_pad - hidden), (0, 0)))
    b2p = b2.reshape(1, -1)
    return w1p, b1p, w2p, b2p


def _default_tb(B):
    # Full-array block for tiny batches (block dim == array dim is legal).
    if B <= 8:
        return B
    # Otherwise split into >=2 tiles (feeds both v7x TensorCores via the
    # "parallel" axis) and cap at 2048 rows: the (tb,8) x block and (tb,2) out
    # block are each lane-padded to (tb,128) f32 in VMEM, double-buffered
    # -> ~tb*2 KiB ~= 4 MiB at tb=2048, safe under v5e's 16 MiB scoped VMEM.
    return min(2048, _round_up(pl.cdiv(B, 2), 8))


@functools.partial(jax.jit, static_argnames=("tb",))
def mlp_forward(x, w1p, b1p, w2p, b2p, *, tb=None):
    """y = tanh(x @ W1 + b1) @ W2 + b2, tiled over the batch dimension.

    Takes pre-padded params from prepare_mlp_params (padding hoisted out of
    the per-call path).  No wrapper pad/slice: the grid is cdiv(B, tb) and the
    ragged last tile is masked by Pallas, so the kernel output is returned
    directly with shape (B, out_dim).
    """
    B, in_dim = x.shape
    h_pad = w1p.shape[1]
    out_dim = w2p.shape[1]
    if tb is None:
        tb = _default_tb(B)
    n_tiles = pl.cdiv(B, tb)

    return pl.pallas_call(
        mlp_kernel,
        out_shape=jax.ShapeDtypeStruct((B, out_dim), x.dtype),
        grid=(n_tiles,),
        in_specs=[
            # x tile streams over B; last dim == full array dim (in_dim).
            pl.BlockSpec((tb, in_dim), lambda i: (i, 0)),
            # Weights/biases stay VMEM-resident (same block every step).
            pl.BlockSpec((in_dim, h_pad), lambda i: (0, 0)),
            pl.BlockSpec((1, h_pad), lambda i: (0, 0)),
            pl.BlockSpec((h_pad, out_dim), lambda i: (0, 0)),
            pl.BlockSpec((1, out_dim), lambda i: (0, 0)),
        ],
        # Narrow (tb, out_dim) output block: only real columns go back to HBM.
        out_specs=pl.BlockSpec((tb, out_dim), lambda i: (i, 0)),
        compiler_params=pltpu.CompilerParams(
            dimension_semantics=("parallel",)),
    )(x, w1p, b1p, w2p, b2p)


def init_linear_params(key, fan_in, fan_out, dtype=jnp.float32):
    # PyTorch nn.Linear default init: U(-1/sqrt(fan_in), 1/sqrt(fan_in)).
    k_w, k_b = jax.random.split(key)
    bound = 1.0 / jnp.sqrt(float(fan_in))
    # Stored as (fan_in, fan_out) so the kernel does x @ W.
    w = jax.random.uniform(k_w, (fan_in, fan_out), dtype, -bound, bound)
    b = jax.random.uniform(k_b, (1, fan_out), dtype, -bound, bound)
    return w, b


def reference_mlp(x, w1, b1, w2, b2):
    return jnp.tanh(x @ w1 + b1) @ w2 + b2


if __name__ == "__main__":
    key = jax.random.PRNGKey(0)
    k_x, k_l1, k_l2, k_mid, k_big = jax.random.split(key, 5)

    # PPO-continuous-like shapes: state dim 8, action dim 2.
    in_dim, out_dim = 8, 2
    w1, b1 = init_linear_params(k_l1, in_dim, HIDDEN)
    w2, b2 = init_linear_params(k_l2, HIDDEN, out_dim)

    # Pad params ONCE (hoisted out of the per-call path).
    params = prepare_mlp_params(w1, b1, w2, b2)

    # 1) Tiny act()-style batch: single full-array block.
    x = jax.random.normal(k_x, (4, in_dim), jnp.float32)
    out = jax.block_until_ready(mlp_forward(x, *params))
    ref = reference_mlp(x, w1, b1, w2, b2)
    assert out.shape == (4, out_dim)
    assert jnp.allclose(out, ref, atol=1e-5, rtol=1e-5)

    # 2) Ragged batch: tb does not divide B; last tile is masked in-kernel
    #    (no wrapper-side pad/slice HBM passes).
    xm = jax.random.normal(k_mid, (300, in_dim), jnp.float32)
    out_m = jax.block_until_ready(mlp_forward(xm, *params))
    ref_m = reference_mlp(xm, w1, b1, w2, b2)
    assert out_m.shape == (300, out_dim)
    assert jnp.allclose(out_m, ref_m, atol=1e-5, rtol=1e-5)

    # 3) Rollout batch: 2 even tiles on the "parallel" B axis (v7x megacore).
    xb = jax.random.normal(k_big, (512, in_dim), jnp.float32)
    out_b = jax.block_until_ready(mlp_forward(xb, *params))
    ref_b = reference_mlp(xb, w1, b1, w2, b2)
    assert out_b.shape == (512, out_dim)
    assert jnp.allclose(out_b, ref_b, atol=1e-5, rtol=1e-5)

    print("KERNEL_OK")
</pallas_src>

<mosaic_0001>
module attributes {stable_mosaic.version = 11 : i64} {
  func.func @mlp_kernel(%arg0: i32, %arg1: memref<4x8xf32, #tpu.memory_space<vmem>>, %arg2: memref<8x128xf32, #tpu.memory_space<vmem>>, %arg3: memref<1x128xf32, #tpu.memory_space<vmem>>, %arg4: memref<128x2xf32, #tpu.memory_space<vmem>>, %arg5: memref<1x2xf32, #tpu.memory_space<vmem>>, %arg6: memref<4x2xf32, #tpu.memory_space<vmem>>) attributes {dimension_semantics = [#tpu.dimension_semantics<parallel>], iteration_bounds = array<i64: 1>, scalar_prefetch = 0 : i64, scratch_operands = 0 : i64, tpu.core_type = #tpu.core_type<tc>, window_params = [{transform_indices = @transform_0, window_bounds = array<i64: 4, 8>}, {pipeline_mode = #tpu.pipeline_mode<synchronous>, transform_indices = @transform_1, window_bounds = array<i64: 8, 128>}, {pipeline_mode = #tpu.pipeline_mode<synchronous>, transform_indices = @transform_2, window_bounds = array<i64: 1, 128>}, {pipeline_mode = #tpu.pipeline_mode<synchronous>, transform_indices = @transform_3, window_bounds = array<i64: 128, 2>}, {pipeline_mode = #tpu.pipeline_mode<synchronous>, transform_indices = @transform_4, window_bounds = array<i64: 1, 2>}, {transform_indices = @transform_5, window_bounds = array<i64: 4, 2>}]} {
    %c0 = arith.constant 0 : index
    %c0_0 = arith.constant 0 : index
    %0 = vector.load %arg1[%c0, %c0_0] : memref<4x8xf32, #tpu.memory_space<vmem>>, vector<4x8xf32>
    %c0_1 = arith.constant 0 : index
    %c0_2 = arith.constant 0 : index
    %1 = vector.load %arg2[%c0_1, %c0_2] : memref<8x128xf32, #tpu.memory_space<vmem>>, vector<8x128xf32>
    %cst = arith.constant dense<0.000000e+00> : vector<4x128xf32>
    %2 = tpu.matmul %0, %1, %cst {dimension_numbers = #tpu.dot_dimension_numbers<[1], [0], [0], [1], [0, 0, 1, 1], [], []>} : vector<4x8xf32>, vector<8x128xf32>, vector<4x128xf32> -> vector<4x128xf32>
    %c0_3 = arith.constant 0 : index
    %c0_4 = arith.constant 0 : index
    %3 = vector.load %arg3[%c0_3, %c0_4] : memref<1x128xf32, #tpu.memory_space<vmem>>, vector<1x128xf32>
    %4 = vector.broadcast %3 : vector<1x128xf32> to vector<4x128xf32>
    %5 = arith.addf %2, %4 : vector<4x128xf32>
    %6 = math.tanh %5 : vector<4x128xf32>
    %c0_5 = arith.constant 0 : index
    %c0_6 = arith.constant 0 : index
    %7 = vector.load %arg4[%c0_5, %c0_6] : memref<128x2xf32, #tpu.memory_space<vmem>>, vector<128x2xf32>
    %cst_7 = arith.constant dense<0.000000e+00> : vector<4x2xf32>
    %8 = tpu.matmul %6, %7, %cst_7 {dimension_numbers = #tpu.dot_dimension_numbers<[1], [0], [0], [1], [0, 0, 1, 1], [], []>} : vector<4x128xf32>, vector<128x2xf32>, vector<4x2xf32> -> vector<4x2xf32>
    %c0_8 = arith.constant 0 : index
    %c0_9 = arith.constant 0 : index
    %9 = vector.load %arg5[%c0_8, %c0_9] : memref<1x2xf32, #tpu.memory_space<vmem>>, vector<1x2xf32>
    %10 = vector.broadcast %9 : vector<1x2xf32> to vector<4x2xf32>
    %11 = arith.addf %8, %10 : vector<4x2xf32>
    %c0_10 = arith.constant 0 : index
    %c0_11 = arith.constant 0 : index
    %12 = vector.load %arg6[%c0_10, %c0_11] : memref<4x2xf32, #tpu.memory_space<vmem>>, vector<4x2xf32>
    tpu.vector_store %arg6[%c0_10, %c0_11], %11 {strides = array<i32>} : memref<4x2xf32, #tpu.memory_space<vmem>>, vector<4x2xf32>,
    return
  }
  func.func @transform_0(%arg0: i32) -> (i32, i32) {
    %c0_i32 = arith.constant 0 : i32
    %c0_i32_0 = arith.constant 0 : i32
    return %arg0, %c0_i32 : i32, i32
  }
  func.func @transform_1(%arg0: i32) -> (i32, i32) {
    %c0_i32 = arith.constant 0 : i32
    %c0_i32_0 = arith.constant 0 : i32
    %c0_i32_1 = arith.constant 0 : i32
    return %c0_i32, %c0_i32_0 : i32, i32
  }
  func.func @transform_2(%arg0: i32) -> (i32, i32) {
    %c0_i32 = arith.constant 0 : i32
    %c0_i32_0 = arith.constant 0 : i32
    %c0_i32_1 = arith.constant 0 : i32
    return %c0_i32, %c0_i32_0 : i32, i32
  }
  func.func @transform_3(%arg0: i32) -> (i32, i32) {
    %c0_i32 = arith.constant 0 : i32
    %c0_i32_0 = arith.constant 0 : i32
    %c0_i32_1 = arith.constant 0 : i32
    return %c0_i32, %c0_i32_0 : i32, i32
  }
  func.func @transform_4(%arg0: i32) -> (i32, i32) {
    %c0_i32 = arith.constant 0 : i32
    %c0_i32_0 = arith.constant 0 : i32
    %c0_i32_1 = arith.constant 0 : i32
    return %c0_i32, %c0_i32_0 : i32, i32
  }
  func.func @transform_5(%arg0: i32) -> (i32, i32) {
    %c0_i32 = arith.constant 0 : i32
    %c0_i32_0 = arith.constant 0 : i32
    return %arg0, %c0_i32 : i32, i32
  }
}

</mosaic_0001>

<llo_original>
// kernel: mlp_forward.1
$region0: #{mlp_forward.1}
  #allocation0 [shape = 'u32[]', space=smem, size = 0x4, offset = 0x4, fixed_abs, tag = 'smem constant byte address 0x4 - core index']
  #allocation1 [shape = 'u32[144,128]{1,0:T(1,128)}', space=vmem, size = 0x12000, scoped, tag = 'internal scratch']
  %s0 = inlined_call_operand.vmem [shape: f32[4,8], index: 0, kind: input, shape index: {}]
  %s1 = inlined_call_operand.vmem [shape: f32[8,128], index: 1, kind: input, shape index: {}]
  %s2 = inlined_call_operand.vmem [shape: f32[1,128], index: 2, kind: input, shape index: {}]
  %s3 = inlined_call_operand.vmem [shape: f32[128,2], index: 3, kind: input, shape index: {}]
  %s4 = inlined_call_operand.vmem [shape: f32[1,2], index: 4, kind: input, shape index: {}]
  %s5 = inlined_call_operand.vmem [shape: f32[4,2], index: 5, kind: output, shape index: {}]
  %s6 = sld [smem:[#allocation0]]
  $region30: #{mlp_forward.1} parent=0
    _
  %s8 = ssub.s32 1, %s6
  %s9 = scalar_select 0, %s8, %s6
  // Predicated region
  $region2: #{mlp_forward.1} parent=0 // pred_check
    _
  $region3: #{mlp_forward.1} parent=0 // pred_check_branch
    %11 = sbr.rel (0) target = $region5
  $region4: #{mlp_forward.1} parent=0 // pred_region
    _
  $region5: #{mlp_forward.1} parent=0 // pred_fallthru
    _
  // Predicated region
  $region6: #{mlp_forward.1} parent=0 // pred_check
    _
  $region7: #{mlp_forward.1} parent=0 // pred_check_branch
    %13 = sbr.rel (0) target = $region9
  $region8: #{mlp_forward.1} parent=0 // pred_region
    _
  $region9: #{mlp_forward.1} parent=0 // pred_fallthru
    _
  // Predicated region
  $region10: #{mlp_forward.1} parent=0 // pred_check
    _
  $region11: #{mlp_forward.1} parent=0 // pred_check_branch
    %15 = sbr.rel (0) target = $region13
  $region12: #{mlp_forward.1} parent=0 // pred_region
    _
  $region13: #{mlp_forward.1} parent=0 // pred_fallthru
    _
  // Predicated region
  $region14: #{mlp_forward.1} parent=0 // pred_check
    _
  $region15: #{mlp_forward.1} parent=0 // pred_check_branch
    %17 = sbr.rel (0) target = $region17
  $region16: #{mlp_forward.1} parent=0 // pred_region
    _
  $region17: #{mlp_forward.1} parent=0 // pred_fallthru
    _
  // Predicated region
  $region18: #{mlp_forward.1} parent=0 // pred_check
    _
  $region19: #{mlp_forward.1} parent=0 // pred_check_branch
    %19 = sbr.rel (0) target = $region21
  $region20: #{mlp_forward.1} parent=0 // pred_region
    _
  $region21: #{mlp_forward.1} parent=0 // pred_fallthru
    _
  %v20 = vld [vmem:[%s0] sm:$0xf]
  %v21 = vld [vmem:[%s1] sm:$0xff]
  %v22 = vld [vmem:[%s2] sm:$0x1]
  %v24 = vlaneseq
  %v25 = vshrl.u32 %v24, 7
  %v26 = vsub.s32 0, %v25
  %v27 = vrot.slane %v22, %v26
  %vm29 = vcmask 64512
  %v31 = vsel %vm29, %v20, 0
  %33 = vmatprep.subr.mxu0 0.0
  %34 = vmatpush1.msra.mxu0 %v21
  %35 = vmatprep.subr.mxu0 0.0
  %36 = vmatpush1.msra.mxu0 0.0
  %37 = vmatprep.subr.mxu0 0.0
  %38 = vmatpush1.msra.mxu0 0.0
  %39 = vmatprep.subr.mxu0 0.0
  %40 = vmatpush1.msra.mxu0 0.0
  %41 = vmatprep.subr.mxu0 0.0
  %42 = vmatpush1.msra.mxu0 0.0
  %43 = vmatprep.subr.mxu0 0.0
  %44 = vmatpush1.msra.mxu0 0.0
  %45 = vmatprep.subr.mxu0 0.0
  %46 = vmatpush1.msra.mxu0 0.0
  %47 = vmatprep.subr.mxu0 0.0
  %48 = vmatpush1.msra.mxu0 0.0
  %49 = vmatprep.subr.mxu0 0.0
  %50 = vmatpush1.msra.mxu0 0.0
  %51 = vmatprep.subr.mxu0 0.0
  %52 = vmatpush1.msra.mxu0 0.0
  %53 = vmatprep.subr.mxu0 0.0
  %54 = vmatpush1.msra.mxu0 0.0
  %55 = vmatprep.subr.mxu0 0.0
  %56 = vmatpush1.msra.mxu0 0.0
  %57 = vmatprep.subr.mxu0 0.0
  %58 = vmatpush1.msra.mxu0 0.0
  %59 = vmatprep.subr.mxu0 0.0
  %60 = vmatpush1.msra.mxu0 0.0
  %61 = vmatprep.subr.mxu0 0.0
  %62 = vmatpush1.msra.mxu0 0.0
  %63 = vmatprep.subr.mxu0 0.0
  %64 = vmatpush1.msra.mxu0 0.0
  %65 = vmatprep.subr.mxu0 0.0
  %66 = vmatpush1.msra.mxu0 0.0
  %67 = vmatprep.subr.mxu0 0.0
  %68 = vmatpush1.msra.mxu0 0.0
  %69 = vmatprep.subr.mxu0 0.0
  %70 = vmatpush1.msra.mxu0 0.0
  %71 = vmatprep.subr.mxu0 0.0
  %72 = vmatpush1.msra.mxu0 0.0
  %73 = vmatprep.subr.mxu0 0.0
  %74 = vmatpush1.msra.mxu0 0.0
  %75 = vmatprep.subr.mxu0 0.0
  %76 = vmatpush1.msra.mxu0 0.0
  %77 = vmatprep.subr.mxu0 0.0
  %78 = vmatpush1.msra.mxu0 0.0
  %79 = vmatprep.subr.mxu0 0.0
  %80 = vmatpush1.msra.mxu0 0.0
  %81 = vmatprep.subr.mxu0 0.0
  %82 = vmatpush1.msra.mxu0 0.0
  %83 = vmatprep.subr.mxu0 0.0
  %84 = vmatpush1.msra.mxu0 0.0
  %85 = vmatprep.subr.mxu0 0.0
  %86 = vmatpush1.msra.mxu0 0.0
  %87 = vmatprep.subr.mxu0 0.0
  %88 = vmatpush1.msra.mxu0 0.0
  %89 = vmatprep.subr.mxu0 0.0
  %90 = vmatpush1.msra.mxu0 0.0
  %91 = vmatprep.subr.mxu0 0.0
  %92 = vmatpush1.msra.mxu0 0.0
  %93 = vmatprep.subr.mxu0 0.0
  %94 = vmatpush1.msra.mxu0 0.0
  %95 = vmatprep.subr.mxu0 0.0
  %96 = vmatpush1.msra.mxu0 0.0
  %97 = vmatprep.mubr.f32.mxu0 0.0
  %98 = vmatmul.mubr.f32.gmra.mrb[0].mxu0 %v31
  %v99 = vpop.f32.mrb[0].mxu0
  %v100 = vadd.f32 %v27, %v99
  %v101 = vpop.f32.mrb[0].mxu0
  %102 = vdwg.mxu0
  %v103 = vtanh.pop %v100
  %v104 = vld [vmem:[%s3] sm:$0xff]
  %v105 = vld [vmem:[%s3 + $0x8] sm:$0xff]
  %v106 = vld [vmem:[%s3 + $0x10] sm:$0xff]
  %v107 = vld [vmem:[%s3 + $0x18] sm:$0xff]
  %v108 = vld [vmem:[%s3 + $0x20] sm:$0xff]
  %v109 = vld [vmem:[%s3 + $0x28] sm:$0xff]
  %v110 = vld [vmem:[%s3 + $0x30] sm:$0xff]
  %v111 = vld [vmem:[%s3 + $0x38] sm:$0xff]
  %v112 = vld [vmem:[%s3 + $0x40] sm:$0xff]
  %v113 = vld [vmem:[%s3 + $0x48] sm:$0xff]
  %v114 = vld [vmem:[%s3 + $0x50] sm:$0xff]
  %v115 = vld [vmem:[%s3 + $0x58] sm:$0xff]
  %v116 = vld [vmem:[%s3 + $0x60] sm:$0xff]
  %v117 = vld [vmem:[%s3 + $0x68] sm:$0xff]
  %v118 = vld [vmem:[%s3 + $0x70] sm:$0xff]
  %v119 = vld [vmem:[%s3 + $0x78] sm:$0xff]
  %v120 = vld [vmem:[%s4] sm:$0x1]
  %v122 = vlaneseq
  %v123 = vshrl.u32 %v122, 7
  %v124 = vsub.s32 0, %v123
  %v125 = vrot.slane %v120, %v124
  %127 = vmatprep.subr.mxu0 0.0
  %128 = vmatpush1.msra.mxu0 %v104
  %129 = vmatprep.subr.mxu0 0.0
  %130 = vmatpush1.msra.mxu0 %v105
  %131 = vmatprep.subr.mxu0 0.0
  %132 = vmatpush1.msra.mxu0 %v106
  %133 = vmatprep.subr.mxu0 0.0
  %134 = vmatpush1.msra.mxu0 %v107
  %135 = vmatprep.subr.mxu0 0.0
  %136 = vmatpush1.msra.mxu0 %v108
  %137 = vmatprep.subr.mxu0 0.0
  %138 = vmatpush1.msra.mxu0 %v109
  %139 = vmatprep.subr.mxu0 0.0
  %140 = vmatpush1.msra.mxu0 %v110
  %141 = vmatprep.subr.mxu0 0.0
  %142 = vmatpush1.msra.mxu0 %v111
  %143 = vmatprep.subr.mxu0 0.0
  %144 = vmatpush1.msra.mxu0 %v112
  %145 = vmatprep.subr.mxu0 0.0
  %146 = vmatpush1.msra.mxu0 %v113
  %147 = vmatprep.subr.mxu0 0.0
  %148 = vmatpush1.msra.mxu0 %v114
  %149 = vmatprep.subr.mxu0 0.0
  %150 = vmatpush1.msra.mxu0 %v115
  %151 = vmatprep.subr.mxu0 0.0
  %152 = vmatpush1.msra.mxu0 %v116
  %153 = vmatprep.subr.mxu0 0.0
  %154 = vmatpush1.msra.mxu0 %v117
  %155 = vmatprep.subr.mxu0 0.0
  %156 = vmatpush1.msra.mxu0 %v118
  %157 = vmatprep.subr.mxu0 0.0
  %158 = vmatpush1.msra.mxu0 %v119
  %159 = vmatprep.subr.mxu0 0.0
  %160 = vmatpush1.msra.mxu0 0.0
  %161 = vmatprep.subr.mxu0 0.0
  %162 = vmatpush1.msra.mxu0 0.0
  %163 = vmatprep.subr.mxu0 0.0
  %164 = vmatpush1.msra.mxu0 0.0
  %165 = vmatprep.subr.mxu0 0.0
  %166 = vmatpush1.msra.mxu0 0.0
  %167 = vmatprep.subr.mxu0 0.0
  %168 = vmatpush1.msra.mxu0 0.0
  %169 = vmatprep.subr.mxu0 0.0
  %170 = vmatpush1.msra.mxu0 0.0
  %171 = vmatprep.subr.mxu0 0.0
  %172 = vmatpush1.msra.mxu0 0.0
  %173 = vmatprep.subr.mxu0 0.0
  %174 = vmatpush1.msra.mxu0 0.0
  %175 = vmatprep.subr.mxu0 0.0
  %176 = vmatpush1.msra.mxu0 0.0
  %177 = vmatprep.subr.mxu0 0.0
  %178 = vmatpush1.msra.mxu0 0.0
  %179 = vmatprep.subr.mxu0 0.0
  %180 = vmatpush1.msra.mxu0 0.0
  %181 = vmatprep.subr.mxu0 0.0
  %182 = vmatpush1.msra.mxu0 0.0
  %183 = vmatprep.subr.mxu0 0.0
  %184 = vmatpush1.msra.mxu0 0.0
  %185 = vmatprep.subr.mxu0 0.0
  %186 = vmatpush1.msra.mxu0 0.0
  %187 = vmatprep.subr.mxu0 0.0
  %188 = vmatpush1.msra.mxu0 0.0
  %189 = vmatprep.subr.mxu0 0.0
  %190 = vmatpush1.msra.mxu0 0.0
  %191 = vmatprep.mubr.f32.mxu0 0.0
  %192 = vmatmul.mubr.f32.gmra.mrb[0].mxu0 %v103
  %v193 = vpop.f32.mrb[0].mxu0
  %v194 = vadd.f32 %v125, %v193
  %v195 = vpop.f32.mrb[0].mxu0
  %196 = vdwg.mxu0
  %vm197 = vcmask 11264
  %198 = vst.msk [vmem:[%s5] sm:$0xf] %vm197, %v194
  // Predicated region
  $region22: #{mlp_forward.1} parent=0 // pred_check
    _
  $region23: #{mlp_forward.1} parent=0 // pred_check_branch
    %200 = sbr.rel (0) target = $region25
  $region24: #{mlp_forward.1} parent=0 // pred_region
    _
  $region25: #{mlp_forward.1} parent=0 // pred_fallthru
    _
  // Predicated region
  $region26: #{mlp_forward.1} parent=0 // pred_check
    _
  $region27: #{mlp_forward.1} parent=0 // pred_check_branch
    %202 = sbr.rel (0) target = $region29
  $region28: #{mlp_forward.1} parent=0 // pred_region
    _
  $region29: #{mlp_forward.1} parent=0 // pred_fallthru
    _

</llo_original>
